<compile_context>
chip_gen: v7x
topology: tpu7x:2x2x1
jax: 0.10.0
libtpu: 0.0.40
codegen_flags: <defaults>
</compile_context>

<pallas_src>
import jax
import jax.numpy as jnp
from jax.experimental import pallas as pl
from jax.experimental.pallas import tpu as pltpu


LANE = 128                # lane width (last dim of every block)
DEFAULT_TILE_ROWS = 512   # sublane rows per grid step (multiple of 8)


def _lambda_kernel(k_ref, y_ref, o_ref):
    """k_ref: SMEM (3,) f32.  y_ref / o_ref: VMEM (3, tile_rows, 128)."""
    k1 = k_ref[0]
    k2 = k_ref[1]
    k3 = k_ref[2]

    y0 = y_ref[0]            # (tile_rows, 128) dense slabs
    y1 = y_ref[1]
    y2 = y_ref[2]

    a = k1 * y0              # k1*y0
    b = k3 * (y1 * y2)       # k3*y1*y2
    c = k2 * (y1 * y1)       # k2*y1^2

    f1 = b - a
    f3 = c
    f2 = -(f1 + f3)          # exact sum(f) == 0 (mass conservation)

    o_ref[0] = f1
    o_ref[1] = f2
    o_ref[2] = f3


def lambda_forward(t, y, k=(0.05, 40000000.0, 20000.0), *,
                   lane_dense_output=False):
    """Robertson RHS.

    t: unused (signature parity with the PyTorch module).
    y: (3,) or (3, B) float32 (species axis first).
    k: length-3 rate constants (the module's trainable parameter; runtime
       input -> no recompile when k changes during training).

    Returns:
      y=(3,)   -> (3,)   (matches torch.stack of scalars)
      y=(3, B) -> (B, 3) (matches torch.stack(..., -1)), or lane-dense (3, B)
                  if lane_dense_output=True (preferred when fusing into a
                  solver — avoids a lane-sparse transpose).
    """
    del t
    k_arr = jnp.asarray(k, dtype=jnp.float32).reshape(3)

    y = jnp.asarray(y, dtype=jnp.float32)
    single = y.ndim == 1
    if single:
        y = y[:, None]
    assert y.shape[0] == 3, y.shape
    B = y.shape[1]

    nb = -(-B // LANE)                       # number of 128-lane column groups
    tile_rows = nb if nb <= DEFAULT_TILE_ROWS else DEFAULT_TILE_ROWS
    nb_pad = -(-nb // tile_rows) * tile_rows
    B_pad = nb_pad * LANE

    if B_pad != B:
        y = jnp.pad(y, ((0, 0), (0, B_pad - B)))
    y3 = y.reshape(3, nb_pad, LANE)

    out3 = pl.pallas_call(
        _lambda_kernel,
        out_shape=jax.ShapeDtypeStruct((3, nb_pad, LANE), y.dtype),
        grid_spec=pltpu.PrefetchScalarGridSpec(
            num_scalar_prefetch=1,
            grid=(nb_pad // tile_rows,),
            in_specs=[pl.BlockSpec((3, tile_rows, LANE),
                                   lambda i, k_ref: (0, i, 0))],
            out_specs=pl.BlockSpec((3, tile_rows, LANE),
                                   lambda i, k_ref: (0, i, 0)),
        ),
        compiler_params=pltpu.CompilerParams(
            dimension_semantics=("parallel",)),
    )(k_arr, y3)

    out = out3.reshape(3, B_pad)[:, :B]
    if single:
        return out[:, 0]          # (3,)
    if lane_dense_output:
        return out                # (3, B), lane-dense
    return out.T                  # (B, 3), matches torch.stack(..., -1)


def lambda_reference(y, k):
    k1, k2, k3 = (jnp.float32(v) for v in k)
    f1 = -k1 * y[0] + k3 * y[1] * y[2]
    f2 = k1 * y[0] - k3 * y[1] * y[2] - k2 * y[1] ** 2
    f3 = k2 * y[1] ** 2
    return jnp.stack((f1, f2, f3), -1)


if __name__ == "__main__":
    k = (0.05, 40000000.0, 20000.0)   # matches the module's __init__
    t = jnp.float32(0.0)
    key = jax.random.PRNGKey(0)

    # Case 1: small batched state (3, 256).
    B1 = 256
    y1 = jax.random.uniform(key, (3, B1), dtype=jnp.float32,
                            minval=0.0, maxval=1.0)
    out1 = jax.block_until_ready(lambda_forward(t, y1, k))
    ref1 = lambda_reference(y1, k)
    assert out1.shape == (B1, 3), out1.shape
    assert jnp.allclose(out1, ref1, rtol=1e-5, atol=1e-2), "mismatch (B=256)"

    # Case 2: ragged batch (exercises lane padding path).
    B2 = 100
    y2 = jax.random.uniform(jax.random.PRNGKey(1), (3, B2), dtype=jnp.float32,
                            minval=0.0, maxval=1.0)
    out2 = jax.block_until_ready(lambda_forward(t, y2, k))
    ref2 = lambda_reference(y2, k)
    assert out2.shape == (B2, 3), out2.shape
    assert jnp.allclose(out2, ref2, rtol=1e-5, atol=1e-2), "mismatch (B=100)"

    # Case 3: unbatched ODE state y = (3,)  (classic Robertson initial cond).
    y3 = jnp.array([1.0, 0.0, 0.0], dtype=jnp.float32)
    out3 = jax.block_until_ready(lambda_forward(t, y3, k))
    ref3 = lambda_reference(y3, k)
    assert out3.shape == (3,), out3.shape
    assert jnp.allclose(out3, ref3, rtol=1e-5, atol=1e-2), "mismatch (1D)"

    # Lane-dense output path (preferred for fusion into a solver).
    out1_ld = jax.block_until_ready(
        lambda_forward(t, y1, k, lane_dense_output=True))
    assert out1_ld.shape == (3, B1), out1_ld.shape
    assert jnp.allclose(out1_ld.T, ref1, rtol=1e-5, atol=1e-2), \
        "mismatch (lane-dense)"

    print("KERNEL_OK")
</pallas_src>

<mosaic_0001>
module attributes {stable_mosaic.version = 11 : i64} {
  func.func @_lambda_kernel(%arg0: i32, %arg1: memref<3xf32, #tpu.memory_space<smem>>, %arg2: memref<3x2x128xf32, #tpu.memory_space<vmem>>, %arg3: memref<3x2x128xf32, #tpu.memory_space<vmem>>) attributes {dimension_semantics = [#tpu.dimension_semantics<parallel>], iteration_bounds = array<i64: 1>, scalar_prefetch = 1 : i64, scratch_operands = 0 : i64, tpu.core_type = #tpu.core_type<tc>, window_params = [{transform_indices = @transform_0, window_bounds = array<i64: 3, 2, 128>}, {transform_indices = @transform_1, window_bounds = array<i64: 3, 2, 128>}]} {
    %c0 = arith.constant 0 : index
    %0 = memref.load %arg1[%c0] : memref<3xf32, #tpu.memory_space<smem>>
    %c1 = arith.constant 1 : index
    %1 = memref.load %arg1[%c1] : memref<3xf32, #tpu.memory_space<smem>>
    %c2 = arith.constant 2 : index
    %2 = memref.load %arg1[%c2] : memref<3xf32, #tpu.memory_space<smem>>
    %c0_0 = arith.constant 0 : index
    %c0_1 = arith.constant 0 : index
    %c0_2 = arith.constant 0 : index
    %3 = vector.load %arg2[%c0_0, %c0_1, %c0_2] : memref<3x2x128xf32, #tpu.memory_space<vmem>>, vector<1x2x128xf32>
    %4 = vector.shape_cast %3 : vector<1x2x128xf32> to vector<2x128xf32>
    %c1_3 = arith.constant 1 : index
    %c0_4 = arith.constant 0 : index
    %c0_5 = arith.constant 0 : index
    %5 = vector.load %arg2[%c1_3, %c0_4, %c0_5] : memref<3x2x128xf32, #tpu.memory_space<vmem>>, vector<1x2x128xf32>
    %6 = vector.shape_cast %5 : vector<1x2x128xf32> to vector<2x128xf32>
    %c2_6 = arith.constant 2 : index
    %c0_7 = arith.constant 0 : index
    %c0_8 = arith.constant 0 : index
    %7 = vector.load %arg2[%c2_6, %c0_7, %c0_8] : memref<3x2x128xf32, #tpu.memory_space<vmem>>, vector<1x2x128xf32>
    %8 = vector.shape_cast %7 : vector<1x2x128xf32> to vector<2x128xf32>
    %9 = vector.broadcast %0 : f32 to vector<2x128xf32>
    %10 = arith.mulf %9, %4 : vector<2x128xf32>
    %11 = arith.mulf %6, %8 : vector<2x128xf32>
    %12 = vector.broadcast %2 : f32 to vector<2x128xf32>
    %13 = arith.mulf %12, %11 : vector<2x128xf32>
    %14 = arith.mulf %6, %6 : vector<2x128xf32>
    %15 = vector.broadcast %1 : f32 to vector<2x128xf32>
    %16 = arith.mulf %15, %14 : vector<2x128xf32>
    %17 = arith.subf %13, %10 : vector<2x128xf32>
    %18 = arith.addf %17, %16 : vector<2x128xf32>
    %cst = arith.constant 0.000000e+00 : f32
    %19 = vector.broadcast %cst : f32 to vector<2x128xf32>
    %20 = arith.subf %19, %18 : vector<2x128xf32>
    %c0_9 = arith.constant 0 : index
    %c0_10 = arith.constant 0 : index
    %c0_11 = arith.constant 0 : index
    %21 = vector.load %arg3[%c0_9, %c0_10, %c0_11] : memref<3x2x128xf32, #tpu.memory_space<vmem>>, vector<1x2x128xf32>
    %22 = vector.shape_cast %21 : vector<1x2x128xf32> to vector<2x128xf32>
    %23 = vector.shape_cast %17 : vector<2x128xf32> to vector<1x2x128xf32>
    tpu.vector_store %arg3[%c0_9, %c0_10, %c0_11], %23 {strides = array<i32>} : memref<3x2x128xf32, #tpu.memory_space<vmem>>, vector<1x2x128xf32>,
    %c1_12 = arith.constant 1 : index
    %c0_13 = arith.constant 0 : index
    %c0_14 = arith.constant 0 : index
    %24 = vector.load %arg3[%c1_12, %c0_13, %c0_14] : memref<3x2x128xf32, #tpu.memory_space<vmem>>, vector<1x2x128xf32>
    %25 = vector.shape_cast %24 : vector<1x2x128xf32> to vector<2x128xf32>
    %26 = vector.shape_cast %20 : vector<2x128xf32> to vector<1x2x128xf32>
    tpu.vector_store %arg3[%c1_12, %c0_13, %c0_14], %26 {strides = array<i32>} : memref<3x2x128xf32, #tpu.memory_space<vmem>>, vector<1x2x128xf32>,
    %c2_15 = arith.constant 2 : index
    %c0_16 = arith.constant 0 : index
    %c0_17 = arith.constant 0 : index
    %27 = vector.load %arg3[%c2_15, %c0_16, %c0_17] : memref<3x2x128xf32, #tpu.memory_space<vmem>>, vector<1x2x128xf32>
    %28 = vector.shape_cast %27 : vector<1x2x128xf32> to vector<2x128xf32>
    %29 = vector.shape_cast %16 : vector<2x128xf32> to vector<1x2x128xf32>
    tpu.vector_store %arg3[%c2_15, %c0_16, %c0_17], %29 {strides = array<i32>} : memref<3x2x128xf32, #tpu.memory_space<vmem>>, vector<1x2x128xf32>,
    return
  }
  func.func @transform_0(%arg0: i32, %arg1: memref<3xf32, #tpu.memory_space<smem>>) -> (i32, i32, i32) {
    %c0_i32 = arith.constant 0 : i32
    %c0_i32_0 = arith.constant 0 : i32
    %c0_i32_1 = arith.constant 0 : i32
    return %c0_i32, %arg0, %c0_i32_0 : i32, i32, i32
  }
  func.func @transform_1(%arg0: i32, %arg1: memref<3xf32, #tpu.memory_space<smem>>) -> (i32, i32, i32) {
    %c0_i32 = arith.constant 0 : i32
    %c0_i32_0 = arith.constant 0 : i32
    %c0_i32_1 = arith.constant 0 : i32
    return %c0_i32, %arg0, %c0_i32_0 : i32, i32, i32
  }
}

</mosaic_0001>

<llo_original>
// kernel: tpu_custom_call.1
$region0: #{tpu_custom_call.1}
  #allocation0 [shape = 'u32[]', space=smem, size = 0x4, offset = 0x4, fixed_abs, tag = 'smem constant byte address 0x4 - core index']
  #allocation1 [shape = 'u32[144,128]{1,0:T(1,128)}', space=vmem, size = 0x12000, scoped, tag = 'internal scratch']
  #allocation2 [shape = 's32[1]{0}', space=sflag, size = 0x4, scoped, tag = 'scoped memory for tpu_custom_call.1']
  #allocation3 [shape = 'u8[512]{0}', space=smem, size = 0x200, scoped, tag = 'prefetched SMEM operand 0']
  %s0 = inlined_call_operand.hbm [shape: f32[3], index: 0, kind: input, shape index: {}]
  %s1 = inlined_call_operand.hbm [shape: f32[3,2,128], index: 1, kind: input, shape index: {}]
  %s2 = inlined_call_operand.hbm [shape: f32[3,2,128], index: 2, kind: output, shape index: {}]
  %s3 = sld [smem:[#allocation0]]
  $region18: #{tpu_custom_call.1} parent=0
    _
  %s5 = ssub.s32 1, %s3
  %s6 = scalar_select 0, %s5, %s3
  %8 = dma.hbm_to_smem %s0, 16, [#allocation3], [#allocation2]
  %9 = dma.done [#allocation2], 16
  %10 = sfence
  $region1: #{tpu_custom_call.1} parent=0
    #allocation4 [shape = 'u8[3072]{0}', space=vmem, size = 0xc00, scoped, tag = 'input window, operand 1, single buffered']
    #allocation5 [shape = 's32[1]{0}', space=sflag, size = 0x4, scoped, tag = 'scoped memory for tpu_custom_call.1']
    #allocation6 [shape = 's32[1]{0}', space=sflag, size = 0x4, scoped, tag = 'scoped memory for tpu_custom_call.1']
    #allocation7 [shape = 'u8[3072]{0}', space=vmem, size = 0xc00, scoped, tag = 'output window, operand 0, single buffered']
    %11 = vsyncpa [#allocation5], 0
    %12 = vsyncpa [#allocation6], 0
    // Predicated region
    $region2: #{tpu_custom_call.1} parent=1 // pred_check
      _
    $region3: #{tpu_custom_call.1} parent=1 // pred_check_branch
      %14 = sbr.rel (0) target = $region5
    $region4: #{tpu_custom_call.1} parent=1 // pred_region
      %s16 = ssub.s32 96, 96
      %17 = vsyncadd [#allocation5], %s16
      %s18 = sshll.u32 [#allocation4], 4
      %s19 = int_to_ptr.vmem [resolvable:$true] %s18
      %24 = dma.hbm_to_vmem [thread:$0]  %s1, 96, %s19, [#allocation5], 32, 32, 2
    $region5: #{tpu_custom_call.1} parent=1 // pred_fallthru
      _
    // Predicated region
    $region6: #{tpu_custom_call.1} parent=1 // pred_check
      _
    $region7: #{tpu_custom_call.1} parent=1 // pred_check_branch
      %26 = sbr.rel (0) target = $region9
    $region8: #{tpu_custom_call.1} parent=1 // pred_region
      %27 = dma.done [#allocation5], 96
    $region9: #{tpu_custom_call.1} parent=1 // pred_fallthru
      _
    %s28 = sld [smem:[#allocation3]]
    %s29 = sld [smem:[#allocation3 + $0x1]]
    %s30 = sld [smem:[#allocation3 + $0x2]]
    %v31 = vld [vmem:[#allocation4] sm:$0x3]
    %s32 = scalar_lea.vmem [#allocation4], 2
    %v33 = vld [vmem:[%s32] sm:$0x3]
    %s34 = scalar_lea.vmem [#allocation4], 4
    %v35 = vld [vmem:[%s34] sm:$0x3]
    %v36 = vstv %s28
    %v37 = vmul.f32 %v36, %v31
    %v38 = vmul.f32 %v33, %v35
    %v39 = vstv %s30
    %v40 = vmul.f32 %v39, %v38
    %v41 = vmul.f32 %v33, %v33
    %v42 = vstv %s29
    %v43 = vmul.f32 %v42, %v41
    %v44 = vsub.f32 %v40, %v37
    %v45 = vadd.f32 %v44, %v43
    %v46 = vsub.f32 0.0, %v45
    %47 = vst [vmem:[#allocation7] sm:$0x3] %v44
    %s48 = scalar_lea.vmem [#allocation7], 2
    %49 = vst [vmem:[%s48] sm:$0x3] %v46
    %s50 = scalar_lea.vmem [#allocation7], 4
    %51 = vst [vmem:[%s50] sm:$0x3] %v43
    // Predicated region
    $region10: #{tpu_custom_call.1} parent=1 // pred_check
      _
    $region11: #{tpu_custom_call.1} parent=1 // pred_check_branch
      %53 = sbr.rel (0) target = $region13
    $region12: #{tpu_custom_call.1} parent=1 // pred_region
      %s55 = ssub.s32 96, 96
      %56 = vsyncadd [#allocation6], %s55
      %s57 = sshll.u32 [#allocation7], 4
      %s58 = int_to_ptr.vmem [resolvable:$true] %s57
      %63 = dma.vmem_to_hbm [thread:$0]  %s58, 96, %s2, [#allocation6], 32, 32, 2
    $region13: #{tpu_custom_call.1} parent=1 // pred_fallthru
      _
    // Predicated region
    $region14: #{tpu_custom_call.1} parent=1 // pred_check
      _
    $region15: #{tpu_custom_call.1} parent=1 // pred_check_branch
      %65 = sbr.rel (0) target = $region17
    $region16: #{tpu_custom_call.1} parent=1 // pred_region
      %66 = dma.done [#allocation6], 96
    $region17: #{tpu_custom_call.1} parent=1 // pred_fallthru
      _
    %67 = vsyncpa [#allocation5], 1
    %68 = vsyncpa [#allocation6], 1

</llo_original>
